<compile_context>
chip_gen: v7x
topology: tpu7x:2x2x1
jax: 0.10.0
libtpu: 0.0.40
codegen_flags: <defaults>
</compile_context>

<pallas_src>
import math

import jax
import jax.numpy as jnp
from jax.experimental import pallas as pl
from jax.experimental.pallas import tpu as pltpu


# ---------------------------------------------------------------------------
# Kernels
# ---------------------------------------------------------------------------

def _mm_kernel_cout_sublane(w_ref, p_ref, b_ref, o_ref, acc_ref):
    """Small-Cout orientation: out[Cout, TM] = W[Cout, TK] @ P[TK, TM] (+bias).

    Grid = (M tiles ["parallel"], K tiles ["arbitrary", last]).
    acc_ref: f32 VMEM scratch, resident across the K axis.
    """
    k = pl.program_id(1)

    @pl.when(k == 0)
    def _():
        acc_ref[...] = jnp.zeros_like(acc_ref)

    acc_ref[...] += jnp.dot(w_ref[...], p_ref[...],
                            preferred_element_type=jnp.float32)

    @pl.when(k == pl.num_programs(1) - 1)
    def _():
        o_ref[...] = (acc_ref[...] + b_ref[...]).astype(o_ref.dtype)


def _mm_kernel_cout_lane(p_ref, w_ref, b_ref, o_ref, acc_ref):
    """Large-Cout orientation: out[TM, TC] = P[TM, TK] @ W[TK, TC] (+bias).

    Grid = (M tiles ["parallel"], Cout tiles ["parallel"], K tiles ["arbitrary"]).
    """
    k = pl.program_id(2)

    @pl.when(k == 0)
    def _():
        acc_ref[...] = jnp.zeros_like(acc_ref)

    acc_ref[...] += jnp.dot(p_ref[...], w_ref[...],
                            preferred_element_type=jnp.float32)

    @pl.when(k == pl.num_programs(2) - 1)
    def _():
        o_ref[...] = (acc_ref[...] + b_ref[...]).astype(o_ref.dtype)


# ---------------------------------------------------------------------------
# Tiling helpers
# ---------------------------------------------------------------------------

_VMEM_BUDGET = 12 * 1024 * 1024   # fits the scoped-VMEM default on v5e/v6e/v7x


def _round_up(x, m):
    return (x + m - 1) // m * m


def _pick_tiles(M, K, c_block, ds):
    """Choose (TM, TK) under the VMEM budget.

    c_block: the fixed Cout-side block size (full Cout for the small-Cout path,
    a 128/256 tile for the large-Cout path).  ds: bytes/elem of the streamed
    (patch / weight) operands.  TK is either the full K or a multiple of 128
    (BlockSpec tiling constraint on whichever axis K lands on).
    """
    # Keep at least ~4 M-tiles when the problem allows it (software pipelining,
    # v7x megacore sharding of the "parallel" M axis).
    tm_cap = max(128, 128 * (M // (4 * 128)))
    tk_opts = [K] + [t for t in (2048, 1024, 512, 256, 128) if t < K]
    for tm in (1024, 512, 256, 128):
        if tm > tm_cap:
            continue
        for tk in tk_opts:
            vmem = (2 * tk * tm * ds          # patch tile (double buffered)
                    + 2 * c_block * tk * ds   # weight tile
                    + 2 * c_block * tm * 4    # f32 output tile
                    + 2 * c_block * 4         # bias
                    + c_block * tm * 4)       # f32 accumulator scratch
            if vmem <= _VMEM_BUDGET:
                return tm, tk
    return 128, 128


# ---------------------------------------------------------------------------
# Wrapper
# ---------------------------------------------------------------------------

def conv2d_pallas(x_nchw, weight, bias, padding=None,
                  compute_dtype=jnp.bfloat16):
    """nn.Conv2d forward (stride=1, dilation=1, groups=1), f32 output.

    x_nchw: (N, Cin, H, W); weight: (Cout, Cin, KH, KW); bias: (Cout,).
    compute_dtype: dtype of the MXU operands (patches & weights); accumulation
    is always f32 (VMEM scratch) and the bias is added in f32.
    """
    pad = int(padding) if padding else 0
    N, Cin, H, W = x_nchw.shape
    Cout, _, KH, KW = weight.shape

    # ---- layout glue: NCHW -> NHWC, spatial padding, operand dtype ---------
    x = jnp.transpose(x_nchw, (0, 2, 3, 1)).astype(compute_dtype)
    if pad:
        x = jnp.pad(x, ((0, 0), (pad, pad), (pad, pad), (0, 0)))
    Hp, Wp = H + 2 * pad, W + 2 * pad
    Ho, Wo = Hp - KH + 1, Wp - KW + 1
    M = N * Ho * Wo                 # output pixels
    K = KH * KW * Cin               # contraction
    ds = jnp.dtype(compute_dtype).itemsize

    if Cout >= 128:
        # ---- (TM, K) x (K, TC) orientation: output lanes = Cout ------------
        # im2col = tap-concat on the channel axis + free reshape (no full-HBM
        # transpose pass); lane-density of the output is preserved (Cout>=128).
        Cp = _round_up(Cout, 128)
        tc = min(Cp, 256)
        Cp = _round_up(Cp, tc)
        tm, tk = _pick_tiles(M, K, tc, ds)
        Mp = _round_up(M, tm)
        Kp = _round_up(K, tk)

        pat = jnp.concatenate(
            [x[:, kh:kh + Ho, kw:kw + Wo, :]
             for kh in range(KH) for kw in range(KW)], axis=-1)  # (N,Ho,Wo,K)
        pat = pat.reshape(M, K)
        pat = jnp.pad(pat, ((0, Mp - M), (0, Kp - K)))

        w2 = jnp.transpose(weight, (2, 3, 1, 0)).reshape(K, Cout)  # (kh,kw,cin)
        w2 = jnp.pad(w2, ((0, Kp - K), (0, Cp - Cout))).astype(compute_dtype)
        b2 = jnp.pad(bias, (0, Cp - Cout)).reshape(1, Cp).astype(jnp.float32)

        grid = (Mp // tm, Cp // tc, Kp // tk)
        cost = pl.CostEstimate(
            flops=2 * Mp * Kp * Cp, transcendentals=0,
            bytes_accessed=ds * (Mp * Kp + Kp * Cp) + 4 * (Mp * Cp + Cp))

        out = pl.pallas_call(
            _mm_kernel_cout_lane,
            out_shape=jax.ShapeDtypeStruct((Mp, Cp), jnp.float32),
            grid=grid,
            in_specs=[
                pl.BlockSpec((tm, tk), lambda i, j, k: (i, k)),   # patches
                pl.BlockSpec((tk, tc), lambda i, j, k: (k, j)),   # weights
                pl.BlockSpec((1, tc), lambda i, j, k: (0, j)),    # bias
            ],
            out_specs=pl.BlockSpec((tm, tc), lambda i, j, k: (i, j)),
            scratch_shapes=[pltpu.VMEM((tm, tc), jnp.float32)],
            compiler_params=pltpu.CompilerParams(
                dimension_semantics=("parallel", "parallel", "arbitrary")),
            cost_estimate=cost,
        )(pat, w2, b2)

        out = out[:M, :Cout].reshape(N, Ho, Wo, Cout)
        return jnp.transpose(out, (0, 3, 1, 2))                   # -> NCHW

    else:
        # ---- (Cout, K) x (K, TM) orientation: output lanes = M -------------
        # For small Cout the output stays lane-dense this way; shapes are small
        # enough that the wrapper-side im2col relayout is negligible.
        tm, tk = _pick_tiles(M, K, Cout, ds)
        Mp = _round_up(M, tm)
        Kp = _round_up(K, tk)

        taps = [x[:, kh:kh + Ho, kw:kw + Wo, :]
                for kh in range(KH) for kw in range(KW)]
        pat = jnp.stack(taps, axis=0)                  # (KH*KW, N, Ho, Wo, Cin)
        pat = jnp.transpose(pat, (0, 4, 1, 2, 3)).reshape(K, M)
        pat = jnp.pad(pat, ((0, Kp - K), (0, Mp - M)))

        w2 = jnp.transpose(weight, (0, 2, 3, 1)).reshape(Cout, K)  # (kh,kw,cin)
        w2 = jnp.pad(w2, ((0, 0), (0, Kp - K))).astype(compute_dtype)
        b2 = bias.reshape(Cout, 1).astype(jnp.float32)

        grid = (Mp // tm, Kp // tk)
        cost = pl.CostEstimate(
            flops=2 * Cout * Kp * Mp, transcendentals=0,
            bytes_accessed=ds * (Kp * Mp + Cout * Kp) + 4 * (Cout * Mp + Cout))

        out = pl.pallas_call(
            _mm_kernel_cout_sublane,
            out_shape=jax.ShapeDtypeStruct((Cout, Mp), jnp.float32),
            grid=grid,
            in_specs=[
                pl.BlockSpec((Cout, tk), lambda i, k: (0, k)),    # weights
                pl.BlockSpec((tk, tm), lambda i, k: (k, i)),      # patches
                pl.BlockSpec((Cout, 1), lambda i, k: (0, 0)),     # bias
            ],
            out_specs=pl.BlockSpec((Cout, tm), lambda i, k: (0, i)),
            scratch_shapes=[pltpu.VMEM((Cout, tm), jnp.float32)],
            compiler_params=pltpu.CompilerParams(
                dimension_semantics=("parallel", "arbitrary")),
            cost_estimate=cost,
        )(w2, pat, b2)

        out = out[:, :M].reshape(Cout, N, Ho, Wo)
        return jnp.transpose(out, (1, 0, 2, 3))                   # -> NCHW


# ---------------------------------------------------------------------------
# Init / reference / demo
# ---------------------------------------------------------------------------

def init_conv_params(key, channels_in, channels_out, kernel_size):
    """Deterministic init matching nn.Conv2d defaults (kaiming-uniform)."""
    kw, kb = jax.random.split(key)
    fan_in = channels_in * kernel_size * kernel_size
    bound = 1.0 / math.sqrt(fan_in)
    weight = jax.random.uniform(
        kw, (channels_out, channels_in, kernel_size, kernel_size),
        minval=-bound, maxval=bound, dtype=jnp.float32)
    bias = jax.random.uniform(
        kb, (channels_out,), minval=-bound, maxval=bound, dtype=jnp.float32)
    return weight, bias


def _conv_ref(x, w, b, pad):
    return jax.lax.conv_general_dilated(
        x, w, window_strides=(1, 1),
        padding=((pad, pad), (pad, pad)),
        dimension_numbers=("NCHW", "OIHW", "NCHW"),
    ) + b.reshape(1, -1, 1, 1)


if __name__ == "__main__":
    key = jax.random.PRNGKey(0)

    # ---- Test 1: module config Conv(4, 8, kernel_size=3, padding=1) --------
    cin, cout, ksz, pad = 4, 8, 3, 1
    N, H, W = 2, 16, 16
    key, kx, kp = jax.random.split(key, 3)
    x = jax.random.normal(kx, (N, cin, H, W), dtype=jnp.float32)
    w, b = init_conv_params(kp, cin, cout, ksz)

    # f32 operand path (exact-parity check with the f32 reference).
    out = jax.block_until_ready(
        conv2d_pallas(x, w, b, pad, compute_dtype=jnp.float32))
    ref = _conv_ref(x, w, b, pad)
    assert out.shape == (N, cout, H, W)
    assert jnp.allclose(out, ref, atol=1e-4, rtol=1e-4)

    # bf16 operand path (default): compare against a reference fed the same
    # bf16-rounded operands, so only the f32 accumulation order differs.
    out_bf = jax.block_until_ready(conv2d_pallas(x, w, b, pad))
    ref_bf = _conv_ref(x.astype(jnp.bfloat16).astype(jnp.float32),
                       w.astype(jnp.bfloat16).astype(jnp.float32), b, pad)
    assert jnp.allclose(out_bf, ref_bf, atol=1e-3, rtol=1e-3)

    # ---- Test 2: large-Cout orientation (output lanes = Cout) --------------
    key, kx2, kp2 = jax.random.split(key, 3)
    x2 = jax.random.normal(kx2, (1, 8, 8, 8), dtype=jnp.float32)
    w2, b2 = init_conv_params(kp2, 8, 128, 3)
    out2 = jax.block_until_ready(conv2d_pallas(x2, w2, b2, 1))
    ref2 = _conv_ref(x2.astype(jnp.bfloat16).astype(jnp.float32),
                     w2.astype(jnp.bfloat16).astype(jnp.float32), b2, 1)
    assert out2.shape == (1, 128, 8, 8)
    assert jnp.allclose(out2, ref2, atol=1e-3, rtol=1e-3)

    # ---- Test 3: padding=None branch of the module --------------------------
    key, kx3, kp3 = jax.random.split(key, 3)
    x3 = jax.random.normal(kx3, (2, 4, 10, 10), dtype=jnp.float32)
    w3, b3 = init_conv_params(kp3, 4, 8, 3)
    out3 = jax.block_until_ready(conv2d_pallas(x3, w3, b3, None))
    ref3 = _conv_ref(x3.astype(jnp.bfloat16).astype(jnp.float32),
                     w3.astype(jnp.bfloat16).astype(jnp.float32), b3, 0)
    assert out3.shape == (2, 8, 8, 8)
    assert jnp.allclose(out3, ref3, atol=1e-3, rtol=1e-3)

    print("KERNEL_OK")
</pallas_src>

<mosaic_0001>
module attributes {stable_mosaic.version = 11 : i64} {
  func.func @_mm_kernel_cout_sublane(%arg0: i32, %arg1: i32, %arg2: memref<8x36xf32, #tpu.memory_space<vmem>>, %arg3: memref<36x128xf32, #tpu.memory_space<vmem>>, %arg4: memref<8x1xf32, #tpu.memory_space<vmem>>, %arg5: memref<8x128xf32, #tpu.memory_space<vmem>>, %arg6: memref<8x128xf32, #tpu.memory_space<vmem>>) attributes {dimension_semantics = [#tpu.dimension_semantics<parallel>, #tpu.dimension_semantics<arbitrary>], iteration_bounds = array<i64: 4, 1>, scalar_prefetch = 0 : i64, scratch_operands = 1 : i64, tpu.core_type = #tpu.core_type<tc>, window_params = [{transform_indices = @transform_0, window_bounds = array<i64: 8, 36>}, {transform_indices = @transform_1, window_bounds = array<i64: 36, 128>}, {pipeline_mode = #tpu.pipeline_mode<synchronous>, transform_indices = @transform_2, window_bounds = array<i64: 8, 1>}, {transform_indices = @transform_3, window_bounds = array<i64: 8, 128>}]} {
    %c0_i32 = arith.constant 0 : i32
    %0 = arith.cmpi eq, %arg1, %c0_i32 : i32
    %1 = arith.extui %0 : i1 to i32
    %c0_i32_0 = arith.constant 0 : i32
    %2 = arith.cmpi ne, %1, %c0_i32_0 : i32
    scf.if %2 {
      %cst_10 = arith.constant 0.000000e+00 : f32
      %12 = vector.broadcast %cst_10 : f32 to vector<8x128xf32>
      %c0_11 = arith.constant 0 : index
      %c0_12 = arith.constant 0 : index
      %13 = vector.load %arg6[%c0_11, %c0_12] : memref<8x128xf32, #tpu.memory_space<vmem>>, vector<8x128xf32>
      tpu.vector_store %arg6[%c0_11, %c0_12], %12 {strides = array<i32>} : memref<8x128xf32, #tpu.memory_space<vmem>>, vector<8x128xf32>,
    } else {
    }
    %c0 = arith.constant 0 : index
    %c0_1 = arith.constant 0 : index
    %3 = vector.load %arg6[%c0, %c0_1] : memref<8x128xf32, #tpu.memory_space<vmem>>, vector<8x128xf32>
    %c0_2 = arith.constant 0 : index
    %c0_3 = arith.constant 0 : index
    %4 = vector.load %arg2[%c0_2, %c0_3] : memref<8x36xf32, #tpu.memory_space<vmem>>, vector<8x36xf32>
    %c0_4 = arith.constant 0 : index
    %c0_5 = arith.constant 0 : index
    %5 = vector.load %arg3[%c0_4, %c0_5] : memref<36x128xf32, #tpu.memory_space<vmem>>, vector<36x128xf32>
    %cst = arith.constant dense<0.000000e+00> : vector<8x128xf32>
    %6 = tpu.matmul %4, %5, %cst {dimension_numbers = #tpu.dot_dimension_numbers<[1], [0], [0], [1], [0, 0, 1, 1], [], []>} : vector<8x36xf32>, vector<36x128xf32>, vector<8x128xf32> -> vector<8x128xf32>
    %7 = arith.addf %3, %6 : vector<8x128xf32>
    %c0_6 = arith.constant 0 : index
    %c0_7 = arith.constant 0 : index
    %8 = vector.load %arg6[%c0_6, %c0_7] : memref<8x128xf32, #tpu.memory_space<vmem>>, vector<8x128xf32>
    tpu.vector_store %arg6[%c0_6, %c0_7], %7 {strides = array<i32>} : memref<8x128xf32, #tpu.memory_space<vmem>>, vector<8x128xf32>,
    %c0_i32_8 = arith.constant 0 : i32
    %9 = arith.cmpi eq, %arg1, %c0_i32_8 : i32
    %10 = arith.extui %9 : i1 to i32
    %c0_i32_9 = arith.constant 0 : i32
    %11 = arith.cmpi ne, %10, %c0_i32_9 : i32
    scf.if %11 {
      %c0_10 = arith.constant 0 : index
      %c0_11 = arith.constant 0 : index
      %12 = vector.load %arg6[%c0_10, %c0_11] : memref<8x128xf32, #tpu.memory_space<vmem>>, vector<8x128xf32>
      %c0_12 = arith.constant 0 : index
      %c0_13 = arith.constant 0 : index
      %13 = vector.load %arg4[%c0_12, %c0_13] : memref<8x1xf32, #tpu.memory_space<vmem>>, vector<8x1xf32>
      %14 = vector.broadcast %13 : vector<8x1xf32> to vector<8x128xf32>
      %15 = arith.addf %12, %14 : vector<8x128xf32>
      %c0_14 = arith.constant 0 : index
      %c0_15 = arith.constant 0 : index
      %16 = vector.load %arg5[%c0_14, %c0_15] : memref<8x128xf32, #tpu.memory_space<vmem>>, vector<8x128xf32>
      tpu.vector_store %arg5[%c0_14, %c0_15], %15 {strides = array<i32>} : memref<8x128xf32, #tpu.memory_space<vmem>>, vector<8x128xf32>,
    } else {
    }
    return
  }
  func.func @transform_0(%arg0: i32, %arg1: i32) -> (i32, i32) {
    %c0_i32 = arith.constant 0 : i32
    %c0_i32_0 = arith.constant 0 : i32
    return %c0_i32, %arg1 : i32, i32
  }
  func.func @transform_1(%arg0: i32, %arg1: i32) -> (i32, i32) {
    %c0_i32 = arith.constant 0 : i32
    return %arg1, %arg0 : i32, i32
  }
  func.func @transform_2(%arg0: i32, %arg1: i32) -> (i32, i32) {
    %c0_i32 = arith.constant 0 : i32
    %c0_i32_0 = arith.constant 0 : i32
    %c0_i32_1 = arith.constant 0 : i32
    return %c0_i32, %c0_i32_0 : i32, i32
  }
  func.func @transform_3(%arg0: i32, %arg1: i32) -> (i32, i32) {
    %c0_i32 = arith.constant 0 : i32
    %c0_i32_0 = arith.constant 0 : i32
    return %c0_i32, %arg0 : i32, i32
  }
}

</mosaic_0001>

<llo_original>
// kernel: tpu_custom_call.1
$region0: #{tpu_custom_call.1}
  #allocation0 [shape = 'u32[]', space=smem, size = 0x4, offset = 0x4, fixed_abs, tag = 'smem constant byte address 0x4 - core index']
  #allocation1 [shape = 'u32[144,128]{1,0:T(1,128)}', space=vmem, size = 0x12000, scoped, tag = 'internal scratch']
  #allocation2 [shape = 'f32[8,128]{1,0:T(8,128)}', space=vmem, size = 0x1000, scoped, tag = 'scratch operand']
  %s0 = inlined_call_operand.vmem [shape: f32[8,36], index: 0, kind: input, shape index: {}]
  %s1 = inlined_call_operand.hbm [shape: f32[36,512], index: 1, kind: input, shape index: {}]
  %s2 = inlined_call_operand.vmem [shape: f32[8,1], index: 2, kind: input, shape index: {}]
  %s3 = inlined_call_operand.hbm [shape: f32[8,512], index: 3, kind: output, shape index: {}]
  %s4 = sld [smem:[#allocation0]]
  $region57: #{tpu_custom_call.1} parent=0
    _
  %s6 = ssub.s32 1, %s4
  %s7 = scalar_select 0, %s6, %s4
  $region1: #{tpu_custom_call.1} parent=0
    #allocation3 [shape = 'u8[40960]{0}', space=vmem, size = 0xa000, scoped, tag = 'input window, operand 1']
    #allocation4 [shape = 's32[2]{0}', space=sflag, size = 0x8, scoped, tag = 'scoped memory for tpu_custom_call.1']
    #allocation5 [shape = 's32[2]{0}', space=sflag, size = 0x8, scoped, tag = 'scoped memory for tpu_custom_call.1']
    #allocation6 [shape = 'u8[8192]{0}', space=vmem, size = 0x2000, scoped, tag = 'output window, operand 0']
    %8 = vsyncpa [#allocation4], 0
    %s9 = scalar_lea.sflag [#allocation4], 1
    %10 = vsyncpa %s9, 0
    %11 = vsyncpa [#allocation5], 0
    %s12 = scalar_lea.sflag [#allocation5], 1
    %13 = vsyncpa %s12, 0
    loop: start=0, step=1, limit=6
    $region2: #{tpu_custom_call.1} parent=1 // loop_pre_header
      _
    $region3: #{tpu_custom_call.1} parent=1 // loop_header
      %s15 = sphi 0, %s19
      %p16 = scmp.ge.s32.totalorder %s15, 6
      %s22 = sphi 0, %s34
      %s23 = sphi 0, %s30
      %s24 = sphi 0, %s22
      %s25 = sphi 0, %s23
      %s26 = sphi 0, %s24
      %s27 = sphi 0, %s25
      %s37 = sphi 0, %s39
      %s40 = sphi 0, %s37
      %s41 = sphi 0, %s40
      %s57 = sphi 0, %s41
      %s65 = sphi 0, %s67
      %s68 = sphi 0, %s65
      %s69 = sphi 0, %s68
      %s85 = sphi 0, %s69
      %s89 = sphi 0, %s89
      %s91 = sphi 0, %s89
      %s92 = sphi 0, %s91
      %s106 = sphi 0, %s92
      %s112 = sphi 0, %s114
      %s115 = sphi 0, %s112
      %s116 = sphi 0, %s115
      %s132 = sphi 0, %s116
    $region4: #{tpu_custom_call.1} parent=1 // loop_header_branch
      %18 = sbr.rel (%p16) target = $region8
    $region5: #{tpu_custom_call.1} parent=1 // loop_body
      %s20 = ssub.s32 %s15, 1
      %s21 = ssub.s32 %s15, 2
      %s28 = sadd.s32 1, %s23
      %p29 = scmp.ge.s32.totalorder %s28, 1
      %s30 = scalar_select %p29, 0, %s28
      %s31 = sadd.s32 1, %s22
      %s32 = scalar_select %p29, %s31, %s22
      %p33 = scmp.ge.s32.totalorder %s32, 4
      %s34 = scalar_select %p33, 0, %s32
      %s35 = ssub.s32 %s23, %s30
      %p36 = scmp.eq.s32.totalorder %s35, 0
      %s38 = sadd.s32 %s37, 1
      %s39 = scalar_select %p36, %s37, %s38
      %p42 = pneg %p36
      %p43 = scmp.eq.s32.totalorder %s15, 3
      %p44 = por %p42, %p43
      %p45 = scmp.ne.s32.totalorder %s37, %s40
      %p46 = scmp.eq.s32.totalorder %s15, 0
      %p47 = por %p45, %p46
      %p48 = scmp.ne.s32.totalorder %s37, %s40
      %p49 = scmp.eq.s32.totalorder %s20, 3
      %p50 = por %p48, %p49
      %p51 = scmp.ne.s32.totalorder %s40, %s41
      %p52 = scmp.eq.s32.totalorder %s20, 0
      %p53 = por %p51, %p52
      %p54 = scmp.ne.s32.totalorder %s40, %s41
      %p55 = scmp.eq.s32.totalorder %s21, 3
      %p56 = por %p54, %p55
      %p58 = scmp.ne.s32.totalorder %s41, %s57
      %p59 = scmp.eq.s32.totalorder %s21, 0
      %p60 = por %p58, %p59
      %s61 = ssub.s32 %s23, %s30
      %s62 = ssub.s32 %s22, %s34
      %s63 = sor.u32 %s61, %s62
      %p64 = scmp.eq.s32.totalorder %s63, 0
      %s66 = sadd.s32 %s65, 1
      %s67 = scalar_select %p64, %s65, %s66
      %p70 = pneg %p64
      %p71 = scmp.eq.s32.totalorder %s15, 3
      %p72 = por %p70, %p71
      %p73 = scmp.ne.s32.totalorder %s65, %s68
      %p74 = scmp.eq.s32.totalorder %s15, 0
      %p75 = por %p73, %p74
      %p76 = scmp.ne.s32.totalorder %s65, %s68
      %p77 = scmp.eq.s32.totalorder %s20, 3
      %p78 = por %p76, %p77
      %p79 = scmp.ne.s32.totalorder %s68, %s69
      %p80 = scmp.eq.s32.totalorder %s20, 0
      %p81 = por %p79, %p80
      %p82 = scmp.ne.s32.totalorder %s68, %s69
      %p83 = scmp.eq.s32.totalorder %s21, 3
      %p84 = por %p82, %p83
      %p86 = scmp.ne.s32.totalorder %s69, %s85
      %p87 = scmp.eq.s32.totalorder %s21, 0
      %p88 = por %p86, %p87
      %s90 = sadd.s32 %s89, 1
      %p93 = scmp.eq.s32.totalorder %s15, 3
      %p94 = scmp.ne.s32.totalorder %s89, %s91
      %p95 = scmp.eq.s32.totalorder %s15, 0
      %p96 = por %p94, %p95
      %p97 = scmp.ne.s32.totalorder %s89, %s91
      %p98 = scmp.eq.s32.totalorder %s20, 3
      %p99 = por %p97, %p98
      %p100 = scmp.ne.s32.totalorder %s91, %s92
      %p101 = scmp.eq.s32.totalorder %s20, 0
      %p102 = por %p100, %p101
      %p103 = scmp.ne.s32.totalorder %s91, %s92
      %p104 = scmp.eq.s32.totalorder %s21, 3
      %p105 = por %p103, %p104
      %p107 = scmp.ne.s32.totalorder %s92, %s106
      %p108 = scmp.eq.s32.totalorder %s21, 0
      %p109 = por %p107, %p108
      %s110 = ssub.s32 %s22, %s34
      %p111 = scmp.eq.s32.totalorder %s110, 0
      %s113 = sadd.s32 %s112, 1
      %s114 = scalar_select %p111, %s112, %s113
      %p117 = pneg %p111
      %p118 = scmp.eq.s32.totalorder %s15, 3
      %p119 = por %p117, %p118
      %p120 = scmp.ne.s32.totalorder %s112, %s115
      %p121 = scmp.eq.s32.totalorder %s15, 0
      %p122 = por %p120, %p121
      %p123 = scmp.ne.s32.totalorder %s112, %s115
      %p124 = scmp.eq.s32.totalorder %s20, 3
      %p125 = por %p123, %p124
      %p126 = scmp.ne.s32.totalorder %s115, %s116
      %p127 = scmp.eq.s32.totalorder %s20, 0
      %p128 = por %p126, %p127
      %p129 = scmp.ne.s32.totalorder %s115, %s116
      %p130 = scmp.eq.s32.totalorder %s21, 3
      %p131 = por %p129, %p130
      %p133 = scmp.ne.s32.totalorder %s116, %s132
      %p134 = scmp.eq.s32.totalorder %s21, 0
      %p135 = por %p133, %p134
      %p136 = scmp.le.s32.totalorder 1, %s15
      %p137 = scmp.lt.s32.totalorder %s15, 5
      %p138 = pnand %p136, %p137
      %p139 = pneg %p138
      // Predicated region
      $region9: #{tpu_custom_call.1} parent=5 // pred_check
        _
      $region10: #{tpu_custom_call.1} parent=5 // pred_check_branch
        %141 = sbr.rel (%p138) target = $region12
      $region11: #{tpu_custom_call.1} parent=5 // pred_region
        %s142 = ssub.s32 %s15, 1
        // Predicated region
        $region13: #{tpu_custom_call.1} parent=11 // pred_check
          %p143 = pneg %p53
        $region14: #{tpu_custom_call.1} parent=11 // pred_check_branch
          %145 = sbr.rel (%p143) target = $region16
        $region15: #{tpu_custom_call.1} parent=11 // pred_region
          %p146 = scmp.lt.s32.totalorder %s25, 0
          %s147 = scalar_select %p146, %s25, 0
          %s148 = smul.addr %s147, 8
          %s149 = scalar_lea.vmem %s0, %s148
        $region16: #{tpu_custom_call.1} parent=11 // pred_fallthru
          _
        // Predicated region
        $region17: #{tpu_custom_call.1} parent=11 // pred_check
          %p150 = pneg %p102
        $region18: #{tpu_custom_call.1} parent=11 // pred_check_branch
          %152 = sbr.rel (%p150) target = $region20
        $region19: #{tpu_custom_call.1} parent=11 // pred_region
          _
        $region20: #{tpu_custom_call.1} parent=11 // pred_fallthru
          _
      $region12: #{tpu_custom_call.1} parent=5 // pred_fallthru
        _
      %p153 = scmp.lt.s32.totalorder %s15, 4
      // Predicated region
      $region21: #{tpu_custom_call.1} parent=5 // pred_check
        %p154 = pneg %p153
      $region22: #{tpu_custom_call.1} parent=5 // pred_check_branch
        %156 = sbr.rel (%p154) target = $region24
      $region23: #{tpu_custom_call.1} parent=5 // pred_region
        // Predicated region
        $region25: #{tpu_custom_call.1} parent=23 // pred_check
          %p157 = pneg %p75
        $region26: #{tpu_custom_call.1} parent=23 // pred_check_branch
          %159 = sbr.rel (%p157) target = $region28
        $region27: #{tpu_custom_call.1} parent=23 // pred_region
          %s160 = sand.u32 %s65, 1
          %s161 = scalar_lea.sflag [#allocation4], %s160
          %s162 = sand.u32 %s65, 1
          %s163 = smul.addr %s162, 40
          %s164 = scalar_lea.vmem [#allocation3], %s163
          %s165 = smul.u32 5, %s23
          %s167 = ssub.s32 640, 640
          %168 = vsyncadd %s161, %s167
          %s169 = smul.addr %s165, 4
          %s170 = sadd.s32 %s22, %s169
          %s171 = smul.addr %s170, 128
          %s172 = scalar_lea.hbm %s1, %s171
          %s173 = sshll.u32 %s164, 4
          %s174 = int_to_ptr.vmem [resolvable:$true] %s173
          %179 = dma.hbm_to_vmem [thread:$0]  %s172, 640, %s174, %s161, 512, 128, 8
        $region28: #{tpu_custom_call.1} parent=23 // pred_fallthru
          _
      $region24: #{tpu_custom_call.1} parent=5 // pred_fallthru
        _
      %p180 = scmp.le.s32.totalorder 1, %s15
      %p181 = scmp.lt.s32.totalorder %s15, 5
      %p182 = pnand %p180, %p181
      %p183 = pneg %p182
      // Predicated region
      $region29: #{tpu_custom_call.1} parent=5 // pred_check
        _
      $region30: #{tpu_custom_call.1} parent=5 // pred_check_branch
        %185 = sbr.rel (%p182) target = $region32
      $region31: #{tpu_custom_call.1} parent=5 // pred_region
        %s186 = ssub.s32 %s15, 1
        %s187 = sand.u32 %s68, 1
        %s188 = scalar_lea.sflag [#allocation4], %s187
        %s189 = sand.u32 %s68, 1
        %s190 = smul.addr %s189, 40
        %s191 = scalar_lea.vmem [#allocation3], %s190
        // Predicated region
        $region33: #{tpu_custom_call.1} parent=31 // pred_check
          %p192 = pneg %p81
        $region34: #{tpu_custom_call.1} parent=31 // pred_check_branch
          %194 = sbr.rel (%p192) target = $region36
        $region35: #{tpu_custom_call.1} parent=31 // pred_region
          %195 = dma.done %s188, 640
        $region36: #{tpu_custom_call.1} parent=31 // pred_fallthru
          _
        %p196 = scmp.lt.s32.totalorder %s25, 0
        %s197 = scalar_select %p196, %s25, 0
        %s198 = smul.addr %s197, 8
        %s199 = scalar_lea.vmem %s0, %s198
        %p200 = pneg %p53
        %p201 = pneg %p50
        %s202 = sand.u32 %s68, 1
        %s203 = scalar_lea.sflag [#allocation4], %s202
        %s204 = sand.u32 %s68, 1
        %s205 = smul.addr %s204, 40
        %s206 = scalar_lea.vmem [#allocation3], %s205
        %p207 = pneg %p81
        %p208 = pneg %p78
        %p209 = pneg %p102
        %p210 = pneg %p99
        %p211 = pneg %p128
        %p212 = pneg %p125
        %s213 = sand.u32 %s115, 1
        %s214 = scalar_lea.sflag [#allocation5], %s213
        %s215 = sand.u32 %s115, 1
        %s216 = smul.addr %s215, 8
        %s217 = scalar_lea.vmem [#allocation6], %s216
        %p218 = scmp.lt.s32.totalorder %s25, 0
        %s219 = scalar_select %p218, %s25, 0
        %s220 = smul.addr %s219, 8
        %s221 = scalar_lea.vmem %s0, %s220
        %s222 = smul.u32 5, %s25
        %p223 = scmp.eq.s32.totalorder %s25, 0
        // Predicated region
        $region37: #{tpu_custom_call.1} parent=31 // pred_check
          %p224 = pneg %p223
        $region38: #{tpu_custom_call.1} parent=31 // pred_check_branch
          %226 = sbr.rel (%p224) target = $region40
        $region39: #{tpu_custom_call.1} parent=31 // pred_region
          %227 = vst [vmem:[#allocation2] sm:$0xff] 0.0
        $region40: #{tpu_custom_call.1} parent=31 // pred_fallthru
          _
        %v228 = vld [vmem:[#allocation2] sm:$0xff]
        %v229 = vld [vmem:[%s221] sm:$0xff]
        %v230 = vld [vmem:[%s191] sm:$0xff]
        %v231 = vld [vmem:[%s191 + $0x8] sm:$0xff]
        %v232 = vld [vmem:[%s191 + $0x10] sm:$0xff]
        %v233 = vld [vmem:[%s191 + $0x18] sm:$0xff]
        %v234 = vld [vmem:[%s191 + $0x20] sm:$0xf]
        %vm235 = vcmask 293888
        %v237 = vsel %vm235, %v229, 0
        %vm239 = vcmask 1043456
        %v241 = vsel %vm239, %v234, 0
        %243 = vmatprep.subr.mxu0 0.0
        %244 = vmatpush1.msra.mxu0 %v230
        %245 = vmatprep.subr.mxu0 0.0
        %246 = vmatpush1.msra.mxu0 %v231
        %247 = vmatprep.subr.mxu0 0.0
        %248 = vmatpush1.msra.mxu0 %v232
        %249 = vmatprep.subr.mxu0 0.0
        %250 = vmatpush1.msra.mxu0 %v233
        %251 = vmatprep.subr.mxu0 0.0
        %252 = vmatpush1.msra.mxu0 %v241
        %253 = vmatprep.subr.mxu0 0.0
        %254 = vmatpush1.msra.mxu0 0.0
        %255 = vmatprep.subr.mxu0 0.0
        %256 = vmatpush1.msra.mxu0 0.0
        %257 = vmatprep.subr.mxu0 0.0
        %258 = vmatpush1.msra.mxu0 0.0
        %259 = vmatprep.subr.mxu0 0.0
        %260 = vmatpush1.msra.mxu0 0.0
        %261 = vmatprep.subr.mxu0 0.0
        %262 = vmatpush1.msra.mxu0 0.0
        %263 = vmatprep.subr.mxu0 0.0
        %264 = vmatpush1.msra.mxu0 0.0
        %265 = vmatprep.subr.mxu0 0.0
        %266 = vmatpush1.msra.mxu0 0.0
        %267 = vmatprep.subr.mxu0 0.0
        %268 = vmatpush1.msra.mxu0 0.0
        %269 = vmatprep.subr.mxu0 0.0
        %270 = vmatpush1.msra.mxu0 0.0
        %271 = vmatprep.subr.mxu0 0.0
        %272 = vmatpush1.msra.mxu0 0.0
        %273 = vmatprep.subr.mxu0 0.0
        %274 = vmatpush1.msra.mxu0 0.0
        %275 = vmatprep.subr.mxu0 0.0
        %276 = vmatpush1.msra.mxu0 0.0
        %277 = vmatprep.subr.mxu0 0.0
        %278 = vmatpush1.msra.mxu0 0.0
        %279 = vmatprep.subr.mxu0 0.0
        %280 = vmatpush1.msra.mxu0 0.0
        %281 = vmatprep.subr.mxu0 0.0
        %282 = vmatpush1.msra.mxu0 0.0
        %283 = vmatprep.subr.mxu0 0.0
        %284 = vmatpush1.msra.mxu0 0.0
        %285 = vmatprep.subr.mxu0 0.0
        %286 = vmatpush1.msra.mxu0 0.0
        %287 = vmatprep.subr.mxu0 0.0
        %288 = vmatpush1.msra.mxu0 0.0
        %289 = vmatprep.subr.mxu0 0.0
        %290 = vmatpush1.msra.mxu0 0.0
        %291 = vmatprep.subr.mxu0 0.0
        %292 = vmatpush1.msra.mxu0 0.0
        %293 = vmatprep.subr.mxu0 0.0
        %294 = vmatpush1.msra.mxu0 0.0
        %295 = vmatprep.subr.mxu0 0.0
        %296 = vmatpush1.msra.mxu0 0.0
        %297 = vmatprep.subr.mxu0 0.0
        %298 = vmatpush1.msra.mxu0 0.0
        %299 = vmatprep.subr.mxu0 0.0
        %300 = vmatpush1.msra.mxu0 0.0
        %301 = vmatprep.subr.mxu0 0.0
        %302 = vmatpush1.msra.mxu0 0.0
        %303 = vmatprep.subr.mxu0 0.0
        %304 = vmatpush1.msra.mxu0 0.0
        %305 = vmatprep.subr.mxu0 0.0
        %306 = vmatpush1.msra.mxu0 0.0
        %307 = vmatprep.mubr.f32.mxu0 0.0
        %308 = vmatmul.mubr.f32.gmra.mrb[0].mxu0 %v237
        %v309 = vpop.f32.mrb[0].mxu0
        %v310 = vadd.f32 0.0, %v309
        %v311 = vpop.f32.mrb[0].mxu0
        %312 = vdwg.mxu0
        %v313 = vadd.f32 %v228, %v310
        %314 = vst [vmem:[#allocation2] sm:$0xff] %v313
        // Predicated region
        $region41: #{tpu_custom_call.1} parent=31 // pred_check
          %p315 = pneg %p223
        $region42: #{tpu_custom_call.1} parent=31 // pred_check_branch
          %317 = sbr.rel (%p315) target = $region44
        $region43: #{tpu_custom_call.1} parent=31 // pred_region
          %v318 = vld [vmem:[#allocation2] sm:$0xff]
          %v319 = vld [vmem:[%s2] sm:$0xff]
          %321 = vset.pattern.permute.xlu0 0
          %322 = vperm.xlu0 %321, %v319
          %v323 = vpop.permute.xlu0 %322
          %v325 = vadd.f32 %v318, %v323
          %326 = vst [vmem:[%s217] sm:$0xff] %v325
        $region44: #{tpu_custom_call.1} parent=31 // pred_fallthru
          _
        %s327 = sand.u32 %s115, 1
        %s328 = scalar_lea.sflag [#allocation5], %s327
        %s329 = sand.u32 %s115, 1
        %s330 = smul.addr %s329, 8
        %s331 = scalar_lea.vmem [#allocation6], %s330
        // Predicated region
        $region45: #{tpu_custom_call.1} parent=31 // pred_check
          %p332 = pneg %p125
        $region46: #{tpu_custom_call.1} parent=31 // pred_check_branch
          %334 = sbr.rel (%p332) target = $region48
        $region47: #{tpu_custom_call.1} parent=31 // pred_region
          %s336 = ssub.s32 128, 128
          %337 = vsyncadd %s328, %s336
          %s338 = smul.addr %s24, 128
          %s339 = scalar_lea.hbm %s3, %s338
          %s341 = sshll.u32 %s331, 4
          %s342 = int_to_ptr.vmem [resolvable:$true] %s341
          %344 = dma.vmem_to_hbm [thread:$0]  %s342, 128, %s339, %s328
        $region48: #{tpu_custom_call.1} parent=31 // pred_fallthru
          _
      $region32: #{tpu_custom_call.1} parent=5 // pred_fallthru
        _
      %p345 = scmp.le.s32.totalorder 2, %s15
      // Predicated region
      $region49: #{tpu_custom_call.1} parent=5 // pred_check
        %p346 = pneg %p345
      $region50: #{tpu_custom_call.1} parent=5 // pred_check_branch
        %348 = sbr.rel (%p346) target = $region52
      $region51: #{tpu_custom_call.1} parent=5 // pred_region
        %s349 = ssub.s32 %s15, 2
        // Predicated region
        $region53: #{tpu_custom_call.1} parent=51 // pred_check
          %p350 = pneg %p131
        $region54: #{tpu_custom_call.1} parent=51 // pred_check_branch
          %352 = sbr.rel (%p350) target = $region56
        $region55: #{tpu_custom_call.1} parent=51 // pred_region
          %s353 = sand.u32 %s116, 1
          %s354 = scalar_lea.sflag [#allocation5], %s353
          %s355 = sand.u32 %s116, 1
          %s356 = smul.addr %s355, 8
          %s357 = scalar_lea.vmem [#allocation6], %s356
          %358 = dma.done %s354, 128
        $region56: #{tpu_custom_call.1} parent=51 // pred_fallthru
          _
      $region52: #{tpu_custom_call.1} parent=5 // pred_fallthru
        _
    $region6: #{tpu_custom_call.1} parent=1 // loop_footer
      %s19 = sadd.s32 1, %s15
    $region7: #{tpu_custom_call.1} parent=1 // loop_footer_branch
      %14 = sbr.rel target = $region3
    $region8: #{tpu_custom_call.1} parent=1 // loop_exit
      _
    %359 = vsyncpa [#allocation4], 1
    %s360 = scalar_lea.sflag [#allocation4], 1
    %361 = vsyncpa %s360, 1
    %362 = vsyncpa [#allocation5], 1
    %s363 = scalar_lea.sflag [#allocation5], 1
    %364 = vsyncpa %s363, 1

</llo_original>
